<compile_context>
chip_gen: v5e
topology: v5e:2x2
jax: 0.10.0
libtpu: 0.0.40
codegen_flags: <defaults>
</compile_context>

<pallas_src>
import jax
import jax.numpy as jnp
from jax import lax
from jax.experimental import pallas as pl
from jax.experimental.pallas import tpu as pltpu

_EPS = 1e-10


def _default_num_splits() -> int:
    """2 on dual-TensorCore chips (v7x), 1 on single-TC chips (v5e/v6e)."""
    try:
        kind = jax.devices()[0].device_kind.lower()
        if "v7" in kind or "7x" in kind:
            return 2
    except Exception:
        pass
    return 1


def _make_distill_kl_kernel(T: float, B: int, TB: int, steps: int,
                            nblocks: int, has_oob: bool):
    invT = 1.0 / float(T)
    has_partial = (B % TB) != 0        # only the last logical block can be partial
    last_blk = nblocks - 1

    def kernel(ys_ref, yt_ref, out_ref, acc_ref):
        s = pl.program_id(0)           # parallel (per-core) split axis
        i = pl.program_id(1)           # sequential reduction axis

        @pl.when(i == 0)
        def _init():
            acc_ref[...] = jnp.zeros_like(acc_ref)

        blk = s * steps + i            # logical (unclamped) block index

        def accumulate(mask_rows: bool):
            # bf16 inputs welcome at the boundary; upcast in-kernel.
            ys = ys_ref[...].astype(jnp.float32) * invT
            yt = yt_ref[...].astype(jnp.float32) * invT
            if mask_rows:
                # Neutralize padded rows *before* exp/log so garbage in the
                # partial last tile can never produce NaN/Inf.
                row_ids = blk * TB + lax.broadcasted_iota(jnp.int32, (TB, 1), 0)
                valid = row_ids < B                       # [TB, 1]
                ys = jnp.where(valid, ys, 0.0)
                yt = jnp.where(valid, yt, 0.0)

            # Student: only the row normalizer of log_softmax(y_s/T) is needed.
            ys = ys - jnp.max(ys, axis=1, keepdims=True)
            log_zs = jnp.log(jnp.sum(jnp.exp(ys), axis=1, keepdims=True))   # [TB,1]

            # Teacher: softmax(y_t/T) and its log in log-softmax form.
            yt = yt - jnp.max(yt, axis=1, keepdims=True)
            yt_exp = jnp.exp(yt)
            zt = jnp.sum(yt_exp, axis=1, keepdims=True)                     # [TB,1]
            inv_zt = pl.reciprocal(zt, approx=False)                        # exact, tiny
            # log_p_t - p_s = (yt - log zt) - (ys - log zs + eps); the eps on p_s
            # is folded into the per-row constant (exact PyTorch parity, free).
            row_const = (log_zs - jnp.log(zt)) - _EPS                       # [TB,1]
            diff = (yt - ys) + row_const                                    # [TB,C]
            # p_t = exp(yt)/zt + eps (eps kept per-element for parity with PyTorch).
            elem = (yt_exp * inv_zt + _EPS) * diff
            kl_row = jnp.sum(elem, axis=1, keepdims=True)                   # [TB,1]
            if mask_rows:
                kl_row = jnp.where(valid, kl_row, 0.0)
            acc_ref[...] += kl_row

        if has_partial:
            # Hot path: full, in-range tiles (no mask work at all).
            @pl.when(blk < last_blk)
            def _hot():
                accumulate(False)

            # Cold path: the single partial last tile.  Clamped out-of-range
            # tail tiles (blk > last_blk) match neither branch -> skipped.
            @pl.when(blk == last_blk)
            def _cold():
                accumulate(True)
        elif has_oob:
            # No partial tile, but uneven split -> skip clamped tail tiles.
            @pl.when(blk < nblocks)
            def _hot():
                accumulate(False)
        else:
            accumulate(False)

        # Single cross-sublane reduce + SMEM write per split, at the last step.
        @pl.when(i == steps - 1)
        def _finalize():
            out_ref[0, 0] = jnp.sum(acc_ref[...])

    return kernel


def distill_kl(y_s: jax.Array, y_t: jax.Array, T: float, *,
               block_rows: int | None = None,
               num_splits: int | None = None) -> jax.Array:
    assert y_s.shape == y_t.shape and y_s.ndim == 2
    B, C = y_s.shape

    # Row-tile size: largest tile whose f32 working set (double-buffered input
    # tiles + ~6 [TB,C] f32 temporaries + the [TB,1] accumulator) stays well
    # inside v7x's 64 MiB per-TC VMEM (and trivially inside v5e/v6e's 128 MiB).
    vmem_target = 32 * 1024 * 1024
    max_tb = max(8, (vmem_target // (12 * C * 4)) // 8 * 8)
    TB = min(B, 1024, max_tb)
    if block_rows is not None:
        TB = min(TB, max(1, int(block_rows)))
    if TB < B:
        TB = max(8, (TB // 8) * 8)      # sublane alignment when not full-dim
    nblocks = pl.cdiv(B, TB)

    # Per-TensorCore split: the leading "parallel" grid axis is what megacore
    # shards across cores; only worth it on dual-TC chips (v7x).
    if num_splits is None:
        num_splits = _default_num_splits()
    nsplit = num_splits if nblocks >= num_splits else 1
    steps = pl.cdiv(nblocks, nsplit)
    has_oob = (steps * nsplit) != nblocks

    def in_index_map(s, i):
        # Clamp logically-out-of-range (s, i) points to the last real block;
        # the kernel skips their compute entirely.
        return (jnp.minimum(s * steps + i, nblocks - 1), 0)

    kernel = _make_distill_kl_kernel(T, B, TB, steps, nblocks, has_oob)

    tile_bytes = TB * C * 4
    vmem_limit = int(min(48 * 1024 * 1024, max(16 * 1024 * 1024, 16 * tile_bytes)))

    partials = pl.pallas_call(
        kernel,
        out_shape=jax.ShapeDtypeStruct((nsplit, 1), jnp.float32),
        grid=(nsplit, steps),
        in_specs=[
            pl.BlockSpec((TB, C), in_index_map),
            pl.BlockSpec((TB, C), in_index_map),
        ],
        out_specs=pl.BlockSpec((1, 1), lambda s, i: (s, 0),
                               memory_space=pltpu.SMEM),
        scratch_shapes=[pltpu.VMEM((TB, 1), jnp.float32)],
        compiler_params=pltpu.CompilerParams(
            dimension_semantics=("parallel", "arbitrary"),
            vmem_limit_bytes=vmem_limit,
        ),
    )(y_s, y_t)

    # Combine per-split partials and apply the T^2 / B scaling in the wrapper.
    return jnp.sum(partials) * (float(T) ** 2) / B


def distill_kl_ref(y_s, y_t, T):
    # Pure-JAX reference matching the PyTorch module exactly.
    eps = 1e-10
    p_s = jax.nn.log_softmax(y_s / T, axis=1) + eps
    p_t = jax.nn.softmax(y_t / T, axis=1) + eps
    return jnp.sum(p_t * (jnp.log(p_t) - p_s)) * (T ** 2) / y_s.shape[0]


if __name__ == "__main__":
    key = jax.random.PRNGKey(0)
    keys = jax.random.split(key, 8)
    T = 4.0

    # Small logits shape consistent with the module: [batch, num_classes].
    B, C = 8, 128
    y_s = jax.random.normal(keys[0], (B, C), dtype=jnp.float32)
    y_t = jax.random.normal(keys[1], (B, C), dtype=jnp.float32)
    loss = jax.block_until_ready(distill_kl(y_s, y_t, T))
    ref = distill_kl_ref(y_s, y_t, T)
    assert jnp.allclose(loss, ref, rtol=1e-5, atol=1e-6), (loss, ref)

    # Tiled path: partial last block (mask cold-path) + uneven 2-split (skipped
    # clamped tail tile) + per-split partial combine.
    B2, C2 = 20, 128
    y_s2 = jax.random.normal(keys[2], (B2, C2), dtype=jnp.float32)
    y_t2 = jax.random.normal(keys[3], (B2, C2), dtype=jnp.float32)
    loss2 = jax.block_until_ready(
        distill_kl(y_s2, y_t2, T, block_rows=8, num_splits=2))
    ref2 = distill_kl_ref(y_s2, y_t2, T)
    assert jnp.allclose(loss2, ref2, rtol=1e-5, atol=1e-6), (loss2, ref2)

    # Class count that is not a lane multiple (full-C block, masked lanes).
    B3, C3 = 16, 100
    y_s3 = jax.random.normal(keys[4], (B3, C3), dtype=jnp.float32)
    y_t3 = jax.random.normal(keys[5], (B3, C3), dtype=jnp.float32)
    loss3 = jax.block_until_ready(distill_kl(y_s3, y_t3, T))
    ref3 = distill_kl_ref(y_s3, y_t3, T)
    assert jnp.allclose(loss3, ref3, rtol=1e-5, atol=1e-6), (loss3, ref3)

    # bf16 logits at the pallas_call boundary (kernel upcasts in-kernel).
    y_s4 = y_s.astype(jnp.bfloat16)
    y_t4 = y_t.astype(jnp.bfloat16)
    loss4 = jax.block_until_ready(distill_kl(y_s4, y_t4, T))
    ref4 = distill_kl_ref(y_s4.astype(jnp.float32), y_t4.astype(jnp.float32), T)
    assert jnp.allclose(loss4, ref4, rtol=1e-5, atol=1e-6), (loss4, ref4)

    print("KERNEL_OK")
</pallas_src>

<mosaic_0001>
module attributes {stable_mosaic.version = 11 : i64} {
  func.func @kernel(%arg0: i32, %arg1: i32, %arg2: memref<8x128xf32, #tpu.memory_space<vmem>>, %arg3: memref<8x128xf32, #tpu.memory_space<vmem>>, %arg4: memref<1x1xf32, #tpu.memory_space<smem>>, %arg5: memref<8x1xf32, #tpu.memory_space<vmem>>) attributes {dimension_semantics = [#tpu.dimension_semantics<parallel>, #tpu.dimension_semantics<arbitrary>], iteration_bounds = array<i64: 1, 1>, scalar_prefetch = 0 : i64, scratch_operands = 1 : i64, tpu.core_type = #tpu.core_type<tc>, window_params = [{transform_indices = @transform_0, window_bounds = array<i64: 8, 128>}, {transform_indices = @transform_1, window_bounds = array<i64: 8, 128>}, {transform_indices = @transform_2, window_bounds = array<i64: 1, 1>}]} {
    %c0_i32 = arith.constant 0 : i32
    %0 = arith.cmpi eq, %arg1, %c0_i32 : i32
    %1 = arith.extui %0 : i1 to i32
    %c0_i32_0 = arith.constant 0 : i32
    %2 = arith.cmpi ne, %1, %c0_i32_0 : i32
    scf.if %2 {
      %cst_18 = arith.constant 0.000000e+00 : f32
      %45 = vector.broadcast %cst_18 : f32 to vector<8x1xf32>
      %c0_19 = arith.constant 0 : index
      %c0_20 = arith.constant 0 : index
      %46 = vector.load %arg5[%c0_19, %c0_20] : memref<8x1xf32, #tpu.memory_space<vmem>>, vector<8x1xf32>
      tpu.vector_store %arg5[%c0_19, %c0_20], %45 {strides = array<i32>} : memref<8x1xf32, #tpu.memory_space<vmem>>, vector<8x1xf32>,
    } else {
    }
    %c0 = arith.constant 0 : index
    %c0_1 = arith.constant 0 : index
    %3 = vector.load %arg2[%c0, %c0_1] : memref<8x128xf32, #tpu.memory_space<vmem>>, vector<8x128xf32>
    %cst = arith.constant 2.500000e-01 : f32
    %4 = vector.broadcast %cst : f32 to vector<8x128xf32>
    %5 = arith.mulf %3, %4 : vector<8x128xf32>
    %c0_2 = arith.constant 0 : index
    %c0_3 = arith.constant 0 : index
    %6 = vector.load %arg3[%c0_2, %c0_3] : memref<8x128xf32, #tpu.memory_space<vmem>>, vector<8x128xf32>
    %cst_4 = arith.constant 2.500000e-01 : f32
    %7 = vector.broadcast %cst_4 : f32 to vector<8x128xf32>
    %8 = arith.mulf %6, %7 : vector<8x128xf32>
    %cst_5 = arith.constant dense<0xFF800000> : vector<8xf32>
    %9 = vector.multi_reduction <maximumf>, %5, %cst_5 [1] : vector<8x128xf32> to vector<8xf32>
    %10 = vector.shape_cast %9 : vector<8xf32> to vector<8x1xf32>
    %11 = vector.broadcast %10 : vector<8x1xf32> to vector<8x128xf32>
    %12 = arith.subf %5, %11 : vector<8x128xf32>
    %13 = math.exp %12 : vector<8x128xf32>
    %cst_6 = arith.constant dense<0.000000e+00> : vector<8xf32>
    %14 = vector.multi_reduction <add>, %13, %cst_6 [1] : vector<8x128xf32> to vector<8xf32>
    %15 = vector.shape_cast %14 : vector<8xf32> to vector<8x1xf32>
    %16 = math.log %15 : vector<8x1xf32>
    %cst_7 = arith.constant dense<0xFF800000> : vector<8xf32>
    %17 = vector.multi_reduction <maximumf>, %8, %cst_7 [1] : vector<8x128xf32> to vector<8xf32>
    %18 = vector.shape_cast %17 : vector<8xf32> to vector<8x1xf32>
    %19 = vector.broadcast %18 : vector<8x1xf32> to vector<8x128xf32>
    %20 = arith.subf %8, %19 : vector<8x128xf32>
    %21 = math.exp %20 : vector<8x128xf32>
    %cst_8 = arith.constant dense<0.000000e+00> : vector<8xf32>
    %22 = vector.multi_reduction <add>, %21, %cst_8 [1] : vector<8x128xf32> to vector<8xf32>
    %23 = vector.shape_cast %22 : vector<8xf32> to vector<8x1xf32>
    %24 = tpu.reciprocal %23 : vector<8x1xf32> -> vector<8x1xf32>
    %25 = math.log %23 : vector<8x1xf32>
    %26 = arith.subf %16, %25 : vector<8x1xf32>
    %cst_9 = arith.constant 1.000000e-10 : f32
    %27 = vector.broadcast %cst_9 : f32 to vector<8x1xf32>
    %28 = arith.subf %26, %27 : vector<8x1xf32>
    %29 = arith.subf %20, %12 : vector<8x128xf32>
    %30 = vector.broadcast %28 : vector<8x1xf32> to vector<8x128xf32>
    %31 = arith.addf %29, %30 : vector<8x128xf32>
    %32 = vector.broadcast %24 : vector<8x1xf32> to vector<8x128xf32>
    %33 = arith.mulf %21, %32 : vector<8x128xf32>
    %cst_10 = arith.constant 1.000000e-10 : f32
    %34 = vector.broadcast %cst_10 : f32 to vector<8x128xf32>
    %35 = arith.addf %33, %34 : vector<8x128xf32>
    %36 = arith.mulf %35, %31 : vector<8x128xf32>
    %cst_11 = arith.constant dense<0.000000e+00> : vector<8xf32>
    %37 = vector.multi_reduction <add>, %36, %cst_11 [1] : vector<8x128xf32> to vector<8xf32>
    %38 = vector.shape_cast %37 : vector<8xf32> to vector<8x1xf32>
    %c0_12 = arith.constant 0 : index
    %c0_13 = arith.constant 0 : index
    %39 = vector.load %arg5[%c0_12, %c0_13] : memref<8x1xf32, #tpu.memory_space<vmem>>, vector<8x1xf32>
    %40 = arith.addf %39, %38 : vector<8x1xf32>
    %c0_14 = arith.constant 0 : index
    %c0_15 = arith.constant 0 : index
    %41 = vector.load %arg5[%c0_14, %c0_15] : memref<8x1xf32, #tpu.memory_space<vmem>>, vector<8x1xf32>
    tpu.vector_store %arg5[%c0_14, %c0_15], %40 {strides = array<i32>} : memref<8x1xf32, #tpu.memory_space<vmem>>, vector<8x1xf32>,
    %c0_i32_16 = arith.constant 0 : i32
    %42 = arith.cmpi eq, %arg1, %c0_i32_16 : i32
    %43 = arith.extui %42 : i1 to i32
    %c0_i32_17 = arith.constant 0 : i32
    %44 = arith.cmpi ne, %43, %c0_i32_17 : i32
    scf.if %44 {
      %c0_18 = arith.constant 0 : index
      %c0_19 = arith.constant 0 : index
      %45 = vector.load %arg5[%c0_18, %c0_19] : memref<8x1xf32, #tpu.memory_space<vmem>>, vector<8x1xf32>
      %46 = vector.shape_cast %45 : vector<8x1xf32> to vector<1x8x1xf32>
      %cst_20 = arith.constant dense<0.000000e+00> : vector<1xf32>
      %47 = vector.multi_reduction <add>, %46, %cst_20 [1, 2] : vector<1x8x1xf32> to vector<1xf32>
      %48 = vector.shape_cast %47 : vector<1xf32> to vector<1x1x1xf32>
      %49 = vector.extract %48[0, 0, 0] : f32 from vector<1x1x1xf32>
      %c0_21 = arith.constant 0 : index
      %c0_22 = arith.constant 0 : index
      %50 = memref.load %arg4[%c0_21, %c0_22] : memref<1x1xf32, #tpu.memory_space<smem>>
      memref.store %49, %arg4[%c0_21, %c0_22] : memref<1x1xf32, #tpu.memory_space<smem>>
    } else {
    }
    return
  }
  func.func @transform_0(%arg0: i32, %arg1: i32) -> (i32, i32) {
    %c1_i32 = arith.constant 1 : i32
    %0 = arith.muli %arg0, %c1_i32 : i32
    %1 = arith.addi %0, %arg1 : i32
    %c0_i32 = arith.constant 0 : i32
    %2 = arith.minsi %1, %c0_i32 : i32
    %c0_i32_0 = arith.constant 0 : i32
    %c0_i32_1 = arith.constant 0 : i32
    return %2, %c0_i32_0 : i32, i32
  }
  func.func @transform_1(%arg0: i32, %arg1: i32) -> (i32, i32) {
    %c1_i32 = arith.constant 1 : i32
    %0 = arith.muli %arg0, %c1_i32 : i32
    %1 = arith.addi %0, %arg1 : i32
    %c0_i32 = arith.constant 0 : i32
    %2 = arith.minsi %1, %c0_i32 : i32
    %c0_i32_0 = arith.constant 0 : i32
    %c0_i32_1 = arith.constant 0 : i32
    return %2, %c0_i32_0 : i32, i32
  }
  func.func @transform_2(%arg0: i32, %arg1: i32) -> (i32, i32) {
    %c0_i32 = arith.constant 0 : i32
    %c0_i32_0 = arith.constant 0 : i32
    return %arg0, %c0_i32 : i32, i32
  }
}

</mosaic_0001>

<llo_original>
// kernel: tpu_custom_call.1
$region0: #{tpu_custom_call.1}
  #allocation0 [shape = 'u32[]', space=smem, size = 0x4, offset = 0x4, fixed_abs, tag = 'smem constant byte address 0x4 - core index']
  #allocation1 [shape = 'u32[72,128]{1,0:T(1,128)}', space=vmem, size = 0x9000, scoped, tag = 'internal scratch']
  #allocation2 [shape = 'f32[8,1]{1,0:T(8,128)}', space=vmem, size = 0x1000, scoped, tag = 'scratch operand']
  %s0 = inlined_call_operand.hbm [shape: f32[8,128], index: 0, kind: input, shape index: {}]
  %s1 = inlined_call_operand.hbm [shape: f32[8,128], index: 1, kind: input, shape index: {}]
  %s2 = inlined_call_operand.hbm [shape: f32[1,1], index: 2, kind: output, shape index: {}]
  %s3 = sld [smem:[#allocation0]]
  $region34: #{tpu_custom_call.1} parent=0
    _
  %s5 = ssub.s32 1, %s3
  %s6 = scalar_select 0, %s5, %s3
  $region1: #{tpu_custom_call.1} parent=0
    #allocation3 [shape = 'u8[4096]{0}', space=vmem, size = 0x1000, scoped, tag = 'input window, operand 0, single buffered']
    #allocation4 [shape = 's32[1]{0}', space=sflag, size = 0x4, scoped, tag = 'scoped memory for tpu_custom_call.1']
    #allocation5 [shape = 's32[1]{0}', space=sflag, size = 0x4, scoped, tag = 'scoped memory for tpu_custom_call.1']
    #allocation6 [shape = 'u8[4096]{0}', space=vmem, size = 0x1000, scoped, tag = 'input window, operand 1, single buffered']
    #allocation7 [shape = 's32[1]{0}', space=sflag, size = 0x4, scoped, tag = 'scoped memory for tpu_custom_call.1']
    #allocation8 [shape = 'u8[512]{0}', space=smem, size = 0x200, scoped, tag = 'output window, operand 0, single buffered']
    %7 = vsyncpa [#allocation4], 0
    %8 = vsyncpa [#allocation7], 0
    %9 = vsyncpa [#allocation5], 0
    // Predicated region
    $region2: #{tpu_custom_call.1} parent=1 // pred_check
      _
    $region3: #{tpu_custom_call.1} parent=1 // pred_check_branch
      %11 = sbr.rel (0) target = $region5
    $region4: #{tpu_custom_call.1} parent=1 // pred_region
      %s12 = sadd.s32 0, 0
      %p13 = scmp.lt.s32.totalorder %s12, 0
      %s14 = scalar_select %p13, %s12, 0
      %16 = vsyncadd [#allocation4], 0
      %s17 = smul.addr %s14, 8
      %s18 = scalar_lea.hbm %s0, %s17
      %s20 = sshll.u32 %s18, 4
      %s21 = int_to_ptr.hbm [resolvable:$true] %s20
      %s22 = sshll.u32 [#allocation3], 4
      %s23 = int_to_ptr.vmem [resolvable:$true] %s22
      %25 = dma.hbm_to_vmem [thread:$0]  %s21, 128, %s23, [#allocation4]
    $region5: #{tpu_custom_call.1} parent=1 // pred_fallthru
      _
    // Predicated region
    $region6: #{tpu_custom_call.1} parent=1 // pred_check
      _
    $region7: #{tpu_custom_call.1} parent=1 // pred_check_branch
      %27 = sbr.rel (0) target = $region9
    $region8: #{tpu_custom_call.1} parent=1 // pred_region
      %s28 = sadd.s32 0, 0
      %p29 = scmp.lt.s32.totalorder %s28, 0
      %s30 = scalar_select %p29, %s28, 0
      %32 = vsyncadd [#allocation7], 0
      %s33 = smul.addr %s30, 8
      %s34 = scalar_lea.hbm %s1, %s33
      %s36 = sshll.u32 %s34, 4
      %s37 = int_to_ptr.hbm [resolvable:$true] %s36
      %s38 = sshll.u32 [#allocation6], 4
      %s39 = int_to_ptr.vmem [resolvable:$true] %s38
      %41 = dma.hbm_to_vmem [thread:$0]  %s37, 128, %s39, [#allocation7]
    $region9: #{tpu_custom_call.1} parent=1 // pred_fallthru
      _
    // Predicated region
    $region10: #{tpu_custom_call.1} parent=1 // pred_check
      _
    $region11: #{tpu_custom_call.1} parent=1 // pred_check_branch
      %43 = sbr.rel (0) target = $region13
    $region12: #{tpu_custom_call.1} parent=1 // pred_region
      %45 = dma.done [#allocation4], 128
    $region13: #{tpu_custom_call.1} parent=1 // pred_fallthru
      _
    // Predicated region
    $region14: #{tpu_custom_call.1} parent=1 // pred_check
      _
    $region15: #{tpu_custom_call.1} parent=1 // pred_check_branch
      %47 = sbr.rel (0) target = $region17
    $region16: #{tpu_custom_call.1} parent=1 // pred_region
      %49 = dma.done [#allocation7], 128
    $region17: #{tpu_custom_call.1} parent=1 // pred_fallthru
      _
    %s50 = sadd.s32 0, 0
    %p51 = scmp.lt.s32.totalorder %s50, 0
    %s52 = scalar_select %p51, %s50, 0
    %s53 = sadd.s32 0, 0
    %p54 = scmp.lt.s32.totalorder %s53, 0
    %s55 = scalar_select %p54, %s53, 0
    %p56 = scmp.eq.s32.totalorder 0, 0
    // Predicated region
    $region18: #{tpu_custom_call.1} parent=1 // pred_check
      %p57 = pneg %p56
    $region19: #{tpu_custom_call.1} parent=1 // pred_check_branch
      %59 = sbr.rel (%p57) target = $region21
    $region20: #{tpu_custom_call.1} parent=1 // pred_region
      %vm60 = vcmask 7168
      %61 = vst.msk [vmem:[#allocation2] sm:$0xff] %vm60, 0.0
    $region21: #{tpu_custom_call.1} parent=1 // pred_fallthru
      _
    %v62 = vld [vmem:[#allocation3] sm:$0xff]
    %v63 = vmul.f32 %v62, 0.25
    %v64 = vld [vmem:[#allocation6] sm:$0xff]
    %v65 = vmul.f32 %v64, 0.25
    %66 = vmax.xlane.f32.xlu0 %v63
    %v67 = vpop.xlane.xlu0 %66
    %v68 = vsub.f32 %v63, %v67
    %v69 = vmul.f32 %v68, 1.442695
    %v70 = vpow.pop %v69
    %71 = vadd.xlane.f32.xlu0 %v70
    %v72 = vpop.xlane.xlu0 %71
    %v73 = vlog2.pop %v72
    %v74 = vmul.f32 %v73, 0.6931472
    %75 = vmax.xlane.f32.xlu0 %v65
    %v76 = vpop.xlane.xlu0 %75
    %v77 = vsub.f32 %v65, %v76
    %v78 = vmul.f32 %v77, 1.442695
    %v79 = vpow.pop %v78
    %80 = vadd.xlane.f32.xlu0 %v79
    %v81 = vpop.xlane.xlu0 %80
    %v82 = vrcp.pop %v81
    %v83 = vmul.f32 %v81, %v82
    %v84 = vsub.f32 1.0, %v83
    %v85 = vmul.f32 %v82, %v84
    %v86 = vadd.f32 %v82, %v85
    %vm87 = vweird.f32 %v81
    %vm88 = vweird.f32 %v82
    %vm89 = vmor %vm87, %vm88
    %v90 = vsel %vm89, %v82, %v86
    %v91 = vand.u32 2147483647, %v81
    %vm92 = vcmp.eq.f32.partialorder %v91, 8.507059e+37
    %v93 = vand.u32 %v81, 2147483648
    %v94 = vor.u32 1.1754944e-38, %v93
    %v95 = vsel %vm92, %v94, %v90
    %v96 = vlog2.pop %v81
    %v97 = vmul.f32 %v96, 0.6931472
    %v98 = vsub.f32 %v74, %v97
    %v99 = vsub.f32 %v98, 1e-10
    %v100 = vsub.f32 %v77, %v68
    %v101 = vadd.f32 %v100, %v99
    %v102 = vmul.f32 %v79, %v95
    %v103 = vadd.f32 %v102, 1e-10
    %v104 = vmul.f32 %v103, %v101
    %105 = vadd.xlane.f32.xlu0 %v104
    %v106 = vpop.xlane.xlu0 %105
    %v107 = vld [vmem:[#allocation2] sm:$0xff]
    %v108 = vadd.f32 %v107, %v106
    %vm109 = vcmask 7168
    %110 = vst.msk [vmem:[#allocation2] sm:$0xff] %vm109, %v108
    // Predicated region
    $region22: #{tpu_custom_call.1} parent=1 // pred_check
      %p111 = pneg %p56
    $region23: #{tpu_custom_call.1} parent=1 // pred_check_branch
      %113 = sbr.rel (%p111) target = $region25
    $region24: #{tpu_custom_call.1} parent=1 // pred_region
      %v114 = vld [vmem:[#allocation2] sm:$0xff]
      %v115 = vsel %vm109, %v114, 0.0
      %116 = vadd.xlane.f32.xlu0 %v115
      %v117 = vpop.xlane.xlu0 %116
      %v118 = vrot.slane %v117, 4
      %v119 = vadd.f32 %v117, %v118
      %v120 = vrot.slane %v119, 2
      %v121 = vadd.f32 %v119, %v120
      %v122 = vrot.slane %v121, 1
      %v123 = vadd.f32 %v121, %v122
      %s124 = vtos %v123
      %s125 = scalar_lea.smem [#allocation8], 0
      %126 = sst [smem:[%s125]] %s124
    $region25: #{tpu_custom_call.1} parent=1 // pred_fallthru
      _
    // Predicated region
    $region26: #{tpu_custom_call.1} parent=1 // pred_check
      _
    $region27: #{tpu_custom_call.1} parent=1 // pred_check_branch
      %128 = sbr.rel (0) target = $region29
    $region28: #{tpu_custom_call.1} parent=1 // pred_region
      %130 = vsyncadd [#allocation5], 0
      %s132 = sshll.u32 %s2, 4
      %s133 = int_to_ptr.hbm [resolvable:$true] %s132
      %135 = dma.smem_to_hbm [#allocation8], 16, %s133, [#allocation5]
    $region29: #{tpu_custom_call.1} parent=1 // pred_fallthru
      _
    // Predicated region
    $region30: #{tpu_custom_call.1} parent=1 // pred_check
      _
    $region31: #{tpu_custom_call.1} parent=1 // pred_check_branch
      %137 = sbr.rel (0) target = $region33
    $region32: #{tpu_custom_call.1} parent=1 // pred_region
      %139 = dma.done [#allocation5], 16
    $region33: #{tpu_custom_call.1} parent=1 // pred_fallthru
      _
    %140 = sfence
    %141 = vsyncpa [#allocation4], 1
    %142 = vsyncpa [#allocation7], 1
    %143 = vsyncpa [#allocation5], 1

</llo_original>
